<compile_context>
chip_gen: v7x
topology: tpu7x:2x2x1
jax: 0.10.0
libtpu: 0.0.40
codegen_flags: <defaults>
</compile_context>

<pallas_src>
import jax
import jax.numpy as jnp
from jax.experimental import pallas as pl
from jax.experimental.pallas import tpu as pltpu

IN_DIM = 21 * 3                       # 63
IN_PAD = 64                           # first-layer K zero-padded (63 is awkward for bf16 packing)
OUT_DIM = 2
OUT_PAD = 128                         # lane-dense padded width of the final layer
DIMS = [IN_DIM, 512, 256, 128, 64, OUT_DIM]
PADDED_DIMS = [IN_PAD, 512, 256, 128, 64, OUT_PAD]
DEFAULT_TILE_BATCH = 1024             # big tile: amortizes per-grid-step overhead on all chips


def _round_up(x, m):
    return ((x + m - 1) // m) * m


def _select_tile_batch(batch, max_tile=DEFAULT_TILE_BATCH):
    """Pick a batch tile: large enough to amortize per-grid-step overhead,
    small enough for VMEM, and (when the batch permits) giving >=2 grid steps
    so both v7x TensorCores get work."""
    max_tile = max(8, _round_up(int(max_tile), 8))
    if batch < 256:
        # Tiny batch: a single tile covering the (8-row rounded) batch.
        return min(max_tile, _round_up(batch, 8))
    # Split roughly in half (>=2 grid steps), round to 128 rows, cap at max_tile.
    return min(max_tile, _round_up(pl.cdiv(batch, 2), 128))


def _mlp_kernel(x_ref,
                w1_ref, b1_ref,
                w2_ref, b2_ref,
                w3_ref, b3_ref,
                w4_ref, b4_ref,
                w5_ref, b5_ref,
                o_ref):
    """Fused MLP forward for one (TB, 64) bf16 batch tile.

    Matmuls: bf16 inputs, f32 MXU accumulation. Bias-add / ReLU / recast run
    in bf16 (bf16 VALU on v6e/v7x; correct-but-widened on v5e, which is
    MXU-bound anyway).
    """
    h = x_ref[...]                                                    # bf16 (TB, 64)

    h = jnp.dot(h, w1_ref[...], preferred_element_type=jnp.float32)
    h = jnp.maximum(h.astype(jnp.bfloat16) + b1_ref[...], 0)

    h = jnp.dot(h, w2_ref[...], preferred_element_type=jnp.float32)
    h = jnp.maximum(h.astype(jnp.bfloat16) + b2_ref[...], 0)

    h = jnp.dot(h, w3_ref[...], preferred_element_type=jnp.float32)
    h = jnp.maximum(h.astype(jnp.bfloat16) + b3_ref[...], 0)

    h = jnp.dot(h, w4_ref[...], preferred_element_type=jnp.float32)
    h = jnp.maximum(h.astype(jnp.bfloat16) + b4_ref[...], 0)

    h = jnp.dot(h, w5_ref[...], preferred_element_type=jnp.float32)
    h = h.astype(jnp.bfloat16) + b5_ref[...]

    o_ref[...] = h                                                    # bf16 (TB, 128), unmasked vst


def prepare_params(params):
    """One-time parameter prep (do this OUTSIDE the per-call forward):
    bf16 weights (in, out) and bf16 (1, out) biases; w1 K-padded 63->64,
    last layer N-padded 2->128 (zero padding, exact)."""
    flat = []
    n = len(params)
    for i, (w, b) in enumerate(params):
        w = jnp.asarray(w, jnp.float32)
        b = jnp.asarray(b, jnp.float32).reshape(1, -1)
        if i == 0:
            w = jnp.pad(w, ((0, IN_PAD - w.shape[0]), (0, 0)))
        if i == n - 1:
            w = jnp.pad(w, ((0, 0), (0, OUT_PAD - w.shape[1])))
            b = jnp.pad(b, ((0, 0), (0, OUT_PAD - b.shape[1])))
        flat.append(w.astype(jnp.bfloat16))
        flat.append(b.astype(jnp.bfloat16))
    return flat


def keypoint_classifier_forward(x, flat_params, *, tile_batch=DEFAULT_TILE_BATCH):
    """x: any shape whose trailing dims flatten to 63 (mirrors x.view(-1, 63)).
    flat_params: output of prepare_params(). Returns (batch, 2) float32 logits."""
    x2d = x.reshape(-1, IN_DIM).astype(jnp.bfloat16)
    batch = x2d.shape[0]

    tb = _select_tile_batch(batch, tile_batch)
    num_tiles = pl.cdiv(batch, tb)
    b_pad = num_tiles * tb

    # Zero-pad ragged batch tail + feature dim 63 -> 64 in one shot.
    x2d = jnp.pad(x2d, ((0, b_pad - batch), (0, IN_PAD - IN_DIM)))

    # BlockSpecs: batch-tiled input/output; weights/biases resident (constant idx).
    in_specs = [pl.BlockSpec((tb, IN_PAD), lambda i: (i, 0))]
    for arr in flat_params:
        in_specs.append(pl.BlockSpec(arr.shape, lambda i: (0, 0)))
    out_spec = pl.BlockSpec((tb, OUT_PAD), lambda i: (i, 0))

    # Advisory cost estimate so XLA schedules surrounding ops sensibly.
    layer_dims = list(zip(PADDED_DIMS[:-1], PADDED_DIMS[1:]))
    flops = 2 * b_pad * sum(k * n for k, n in layer_dims)
    bytes_accessed = (
        int(x2d.size) * 2
        + sum(int(a.size) * a.dtype.itemsize for a in flat_params)
        + b_pad * OUT_PAD * 2
    )
    cost = pl.CostEstimate(flops=flops, transcendentals=0,
                           bytes_accessed=bytes_accessed)

    out = pl.pallas_call(
        _mlp_kernel,
        out_shape=jax.ShapeDtypeStruct((b_pad, OUT_PAD), jnp.bfloat16),
        grid=(num_tiles,),
        in_specs=in_specs,
        out_specs=out_spec,
        compiler_params=pltpu.CompilerParams(
            dimension_semantics=("parallel",)),
        cost_estimate=cost,
    )(x2d, *flat_params)

    return out[:batch, :OUT_DIM].astype(jnp.float32)


def init_params(key):
    """Deterministic init matching nn.Linear default shapes (kaiming-uniform-ish)."""
    params = []
    for i in range(len(DIMS) - 1):
        fan_in, fan_out = DIMS[i], DIMS[i + 1]
        key, kw, kb = jax.random.split(key, 3)
        bound = 1.0 / jnp.sqrt(fan_in)
        w = jax.random.uniform(kw, (fan_in, fan_out), jnp.float32, -bound, bound)
        b = jax.random.uniform(kb, (fan_out,), jnp.float32, -bound, bound)
        params.append((w, b))
    return params


def reference_forward(x, params):
    """Plain-JAX reference mirroring the kernel's mixed precision
    (bf16 matmul inputs, f32 accumulation, bf16 bias/ReLU, bf16 output)."""
    h = x.reshape(-1, IN_DIM).astype(jnp.bfloat16)
    n = len(params)
    for i, (w, b) in enumerate(params):
        acc = jnp.dot(h, w.astype(jnp.bfloat16),
                      preferred_element_type=jnp.float32)
        h = acc.astype(jnp.bfloat16) + b.astype(jnp.bfloat16).reshape(1, -1)
        if i < n - 1:
            h = jnp.maximum(h, 0)
    return h.astype(jnp.float32)


if __name__ == "__main__":
    key = jax.random.PRNGKey(0)
    key, kx = jax.random.split(key)

    # batch=2 keypoint tensors of shape (21, 3), matching the module's view(-1, 63)
    x = jax.random.normal(kx, (2, 21, 3), dtype=jnp.float32)

    params = init_params(key)
    flat_params = prepare_params(params)       # one-time bf16 conversion + padding

    out = keypoint_classifier_forward(x, flat_params)
    out = jax.block_until_ready(out)

    ref = reference_forward(x, params)
    assert out.shape == (2, 2), out.shape
    assert jnp.allclose(out, ref, atol=2e-2, rtol=2e-2), "mismatch vs reference"

    # Also sanity-check a ragged, larger batch so the tiling/padding/megacore path runs.
    key, kx2 = jax.random.split(key)
    x_big = jax.random.normal(kx2, (300, 21, 3), dtype=jnp.float32)
    out_big = jax.block_until_ready(keypoint_classifier_forward(x_big, flat_params))
    ref_big = reference_forward(x_big, params)
    assert out_big.shape == (300, 2), out_big.shape
    assert jnp.allclose(out_big, ref_big, atol=2e-2, rtol=2e-2), "mismatch (big batch)"

    print("KERNEL_OK")
</pallas_src>

<mosaic_0001>
module attributes {stable_mosaic.version = 11 : i64} {
  func.func @_mlp_kernel(%arg0: i32, %arg1: memref<8x64xbf16, #tpu.memory_space<vmem>>, %arg2: memref<64x512xbf16, #tpu.memory_space<vmem>>, %arg3: memref<1x512xbf16, #tpu.memory_space<vmem>>, %arg4: memref<512x256xbf16, #tpu.memory_space<vmem>>, %arg5: memref<1x256xbf16, #tpu.memory_space<vmem>>, %arg6: memref<256x128xbf16, #tpu.memory_space<vmem>>, %arg7: memref<1x128xbf16, #tpu.memory_space<vmem>>, %arg8: memref<128x64xbf16, #tpu.memory_space<vmem>>, %arg9: memref<1x64xbf16, #tpu.memory_space<vmem>>, %arg10: memref<64x128xbf16, #tpu.memory_space<vmem>>, %arg11: memref<1x128xbf16, #tpu.memory_space<vmem>>, %arg12: memref<8x128xbf16, #tpu.memory_space<vmem>>) attributes {dimension_semantics = [#tpu.dimension_semantics<parallel>], iteration_bounds = array<i64: 1>, scalar_prefetch = 0 : i64, scratch_operands = 0 : i64, tpu.core_type = #tpu.core_type<tc>, window_params = [{transform_indices = @transform_0, window_bounds = array<i64: 8, 64>}, {pipeline_mode = #tpu.pipeline_mode<synchronous>, transform_indices = @transform_1, window_bounds = array<i64: 64, 512>}, {pipeline_mode = #tpu.pipeline_mode<synchronous>, transform_indices = @transform_2, window_bounds = array<i64: 1, 512>}, {pipeline_mode = #tpu.pipeline_mode<synchronous>, transform_indices = @transform_3, window_bounds = array<i64: 512, 256>}, {pipeline_mode = #tpu.pipeline_mode<synchronous>, transform_indices = @transform_4, window_bounds = array<i64: 1, 256>}, {pipeline_mode = #tpu.pipeline_mode<synchronous>, transform_indices = @transform_5, window_bounds = array<i64: 256, 128>}, {pipeline_mode = #tpu.pipeline_mode<synchronous>, transform_indices = @transform_6, window_bounds = array<i64: 1, 128>}, {pipeline_mode = #tpu.pipeline_mode<synchronous>, transform_indices = @transform_7, window_bounds = array<i64: 128, 64>}, {pipeline_mode = #tpu.pipeline_mode<synchronous>, transform_indices = @transform_8, window_bounds = array<i64: 1, 64>}, {pipeline_mode = #tpu.pipeline_mode<synchronous>, transform_indices = @transform_9, window_bounds = array<i64: 64, 128>}, {pipeline_mode = #tpu.pipeline_mode<synchronous>, transform_indices = @transform_10, window_bounds = array<i64: 1, 128>}, {transform_indices = @transform_11, window_bounds = array<i64: 8, 128>}]} {
    %c0 = arith.constant 0 : index
    %c0_0 = arith.constant 0 : index
    %0 = vector.load %arg1[%c0, %c0_0] : memref<8x64xbf16, #tpu.memory_space<vmem>>, vector<8x64xbf16>
    %c0_1 = arith.constant 0 : index
    %c0_2 = arith.constant 0 : index
    %1 = vector.load %arg2[%c0_1, %c0_2] : memref<64x512xbf16, #tpu.memory_space<vmem>>, vector<64x512xbf16>
    %cst = arith.constant dense<0.000000e+00> : vector<8x512xf32>
    %2 = tpu.matmul %0, %1, %cst {dimension_numbers = #tpu.dot_dimension_numbers<[1], [0], [0], [1], [0, 0, 1, 1], [], []>} : vector<8x64xbf16>, vector<64x512xbf16>, vector<8x512xf32> -> vector<8x512xf32>
    %3 = arith.truncf %2 : vector<8x512xf32> to vector<8x512xbf16>
    %c0_3 = arith.constant 0 : index
    %c0_4 = arith.constant 0 : index
    %4 = vector.load %arg3[%c0_3, %c0_4] : memref<1x512xbf16, #tpu.memory_space<vmem>>, vector<1x512xbf16>
    %5 = vector.broadcast %4 : vector<1x512xbf16> to vector<8x512xbf16>
    %6 = arith.addf %3, %5 : vector<8x512xbf16>
    %cst_5 = arith.constant 0.000000e+00 : bf16
    %7 = vector.broadcast %cst_5 : bf16 to vector<8x512xbf16>
    %8 = arith.maximumf %6, %7 : vector<8x512xbf16>
    %c0_6 = arith.constant 0 : index
    %c0_7 = arith.constant 0 : index
    %9 = vector.load %arg4[%c0_6, %c0_7] : memref<512x256xbf16, #tpu.memory_space<vmem>>, vector<512x256xbf16>
    %cst_8 = arith.constant dense<0.000000e+00> : vector<8x256xf32>
    %10 = tpu.matmul %8, %9, %cst_8 {dimension_numbers = #tpu.dot_dimension_numbers<[1], [0], [0], [1], [0, 0, 1, 1], [], []>} : vector<8x512xbf16>, vector<512x256xbf16>, vector<8x256xf32> -> vector<8x256xf32>
    %11 = arith.truncf %10 : vector<8x256xf32> to vector<8x256xbf16>
    %c0_9 = arith.constant 0 : index
    %c0_10 = arith.constant 0 : index
    %12 = vector.load %arg5[%c0_9, %c0_10] : memref<1x256xbf16, #tpu.memory_space<vmem>>, vector<1x256xbf16>
    %13 = vector.broadcast %12 : vector<1x256xbf16> to vector<8x256xbf16>
    %14 = arith.addf %11, %13 : vector<8x256xbf16>
    %cst_11 = arith.constant 0.000000e+00 : bf16
    %15 = vector.broadcast %cst_11 : bf16 to vector<8x256xbf16>
    %16 = arith.maximumf %14, %15 : vector<8x256xbf16>
    %c0_12 = arith.constant 0 : index
    %c0_13 = arith.constant 0 : index
    %17 = vector.load %arg6[%c0_12, %c0_13] : memref<256x128xbf16, #tpu.memory_space<vmem>>, vector<256x128xbf16>
    %cst_14 = arith.constant dense<0.000000e+00> : vector<8x128xf32>
    %18 = tpu.matmul %16, %17, %cst_14 {dimension_numbers = #tpu.dot_dimension_numbers<[1], [0], [0], [1], [0, 0, 1, 1], [], []>} : vector<8x256xbf16>, vector<256x128xbf16>, vector<8x128xf32> -> vector<8x128xf32>
    %19 = arith.truncf %18 : vector<8x128xf32> to vector<8x128xbf16>
    %c0_15 = arith.constant 0 : index
    %c0_16 = arith.constant 0 : index
    %20 = vector.load %arg7[%c0_15, %c0_16] : memref<1x128xbf16, #tpu.memory_space<vmem>>, vector<1x128xbf16>
    %21 = vector.broadcast %20 : vector<1x128xbf16> to vector<8x128xbf16>
    %22 = arith.addf %19, %21 : vector<8x128xbf16>
    %cst_17 = arith.constant 0.000000e+00 : bf16
    %23 = vector.broadcast %cst_17 : bf16 to vector<8x128xbf16>
    %24 = arith.maximumf %22, %23 : vector<8x128xbf16>
    %c0_18 = arith.constant 0 : index
    %c0_19 = arith.constant 0 : index
    %25 = vector.load %arg8[%c0_18, %c0_19] : memref<128x64xbf16, #tpu.memory_space<vmem>>, vector<128x64xbf16>
    %cst_20 = arith.constant dense<0.000000e+00> : vector<8x64xf32>
    %26 = tpu.matmul %24, %25, %cst_20 {dimension_numbers = #tpu.dot_dimension_numbers<[1], [0], [0], [1], [0, 0, 1, 1], [], []>} : vector<8x128xbf16>, vector<128x64xbf16>, vector<8x64xf32> -> vector<8x64xf32>
    %27 = arith.truncf %26 : vector<8x64xf32> to vector<8x64xbf16>
    %c0_21 = arith.constant 0 : index
    %c0_22 = arith.constant 0 : index
    %28 = vector.load %arg9[%c0_21, %c0_22] : memref<1x64xbf16, #tpu.memory_space<vmem>>, vector<1x64xbf16>
    %29 = vector.broadcast %28 : vector<1x64xbf16> to vector<8x64xbf16>
    %30 = arith.addf %27, %29 : vector<8x64xbf16>
    %cst_23 = arith.constant 0.000000e+00 : bf16
    %31 = vector.broadcast %cst_23 : bf16 to vector<8x64xbf16>
    %32 = arith.maximumf %30, %31 : vector<8x64xbf16>
    %c0_24 = arith.constant 0 : index
    %c0_25 = arith.constant 0 : index
    %33 = vector.load %arg10[%c0_24, %c0_25] : memref<64x128xbf16, #tpu.memory_space<vmem>>, vector<64x128xbf16>
    %cst_26 = arith.constant dense<0.000000e+00> : vector<8x128xf32>
    %34 = tpu.matmul %32, %33, %cst_26 {dimension_numbers = #tpu.dot_dimension_numbers<[1], [0], [0], [1], [0, 0, 1, 1], [], []>} : vector<8x64xbf16>, vector<64x128xbf16>, vector<8x128xf32> -> vector<8x128xf32>
    %35 = arith.truncf %34 : vector<8x128xf32> to vector<8x128xbf16>
    %c0_27 = arith.constant 0 : index
    %c0_28 = arith.constant 0 : index
    %36 = vector.load %arg11[%c0_27, %c0_28] : memref<1x128xbf16, #tpu.memory_space<vmem>>, vector<1x128xbf16>
    %37 = vector.broadcast %36 : vector<1x128xbf16> to vector<8x128xbf16>
    %38 = arith.addf %35, %37 : vector<8x128xbf16>
    %c0_29 = arith.constant 0 : index
    %c0_30 = arith.constant 0 : index
    %39 = vector.load %arg12[%c0_29, %c0_30] : memref<8x128xbf16, #tpu.memory_space<vmem>>, vector<8x128xbf16>
    tpu.vector_store %arg12[%c0_29, %c0_30], %38 {strides = array<i32>} : memref<8x128xbf16, #tpu.memory_space<vmem>>, vector<8x128xbf16>,
    return
  }
  func.func @transform_0(%arg0: i32) -> (i32, i32) {
    %c0_i32 = arith.constant 0 : i32
    %c0_i32_0 = arith.constant 0 : i32
    return %arg0, %c0_i32 : i32, i32
  }
  func.func @transform_1(%arg0: i32) -> (i32, i32) {
    %c0_i32 = arith.constant 0 : i32
    %c0_i32_0 = arith.constant 0 : i32
    %c0_i32_1 = arith.constant 0 : i32
    return %c0_i32, %c0_i32_0 : i32, i32
  }
  func.func @transform_2(%arg0: i32) -> (i32, i32) {
    %c0_i32 = arith.constant 0 : i32
    %c0_i32_0 = arith.constant 0 : i32
    %c0_i32_1 = arith.constant 0 : i32
    return %c0_i32, %c0_i32_0 : i32, i32
  }
  func.func @transform_3(%arg0: i32) -> (i32, i32) {
    %c0_i32 = arith.constant 0 : i32
    %c0_i32_0 = arith.constant 0 : i32
    %c0_i32_1 = arith.constant 0 : i32
    return %c0_i32, %c0_i32_0 : i32, i32
  }
  func.func @transform_4(%arg0: i32) -> (i32, i32) {
    %c0_i32 = arith.constant 0 : i32
    %c0_i32_0 = arith.constant 0 : i32
    %c0_i32_1 = arith.constant 0 : i32
    return %c0_i32, %c0_i32_0 : i32, i32
  }
  func.func @transform_5(%arg0: i32) -> (i32, i32) {
    %c0_i32 = arith.constant 0 : i32
    %c0_i32_0 = arith.constant 0 : i32
    %c0_i32_1 = arith.constant 0 : i32
    return %c0_i32, %c0_i32_0 : i32, i32
  }
  func.func @transform_6(%arg0: i32) -> (i32, i32) {
    %c0_i32 = arith.constant 0 : i32
    %c0_i32_0 = arith.constant 0 : i32
    %c0_i32_1 = arith.constant 0 : i32
    return %c0_i32, %c0_i32_0 : i32, i32
  }
  func.func @transform_7(%arg0: i32) -> (i32, i32) {
    %c0_i32 = arith.constant 0 : i32
    %c0_i32_0 = arith.constant 0 : i32
    %c0_i32_1 = arith.constant 0 : i32
    return %c0_i32, %c0_i32_0 : i32, i32
  }
  func.func @transform_8(%arg0: i32) -> (i32, i32) {
    %c0_i32 = arith.constant 0 : i32
    %c0_i32_0 = arith.constant 0 : i32
    %c0_i32_1 = arith.constant 0 : i32
    return %c0_i32, %c0_i32_0 : i32, i32
  }
  func.func @transform_9(%arg0: i32) -> (i32, i32) {
    %c0_i32 = arith.constant 0 : i32
    %c0_i32_0 = arith.constant 0 : i32
    %c0_i32_1 = arith.constant 0 : i32
    return %c0_i32, %c0_i32_0 : i32, i32
  }
  func.func @transform_10(%arg0: i32) -> (i32, i32) {
    %c0_i32 = arith.constant 0 : i32
    %c0_i32_0 = arith.constant 0 : i32
    %c0_i32_1 = arith.constant 0 : i32
    return %c0_i32, %c0_i32_0 : i32, i32
  }
  func.func @transform_11(%arg0: i32) -> (i32, i32) {
    %c0_i32 = arith.constant 0 : i32
    %c0_i32_0 = arith.constant 0 : i32
    return %arg0, %c0_i32 : i32, i32
  }
}

</mosaic_0001>

<llo_original>
// kernel: tpu_custom_call.1
$region0: #{tpu_custom_call.1}
  #allocation0 [shape = 'u32[]', space=smem, size = 0x4, offset = 0x4, fixed_abs, tag = 'smem constant byte address 0x4 - core index']
  #allocation1 [shape = 'u32[144,128]{1,0:T(1,128)}', space=vmem, size = 0x12000, scoped, tag = 'internal scratch']
  %s0 = inlined_call_operand.vmem [shape: bf16[8,64], index: 0, kind: input, shape index: {}]
  %s1 = inlined_call_operand.hbm [shape: bf16[64,512], index: 1, kind: input, shape index: {}]
  %s2 = inlined_call_operand.vmem [shape: bf16[1,512], index: 2, kind: input, shape index: {}]
  %s3 = inlined_call_operand.hbm [shape: bf16[512,256], index: 3, kind: input, shape index: {}]
  %s4 = inlined_call_operand.vmem [shape: bf16[1,256], index: 4, kind: input, shape index: {}]
  %s5 = inlined_call_operand.hbm [shape: bf16[256,128], index: 5, kind: input, shape index: {}]
  %s6 = inlined_call_operand.vmem [shape: bf16[1,128], index: 6, kind: input, shape index: {}]
  %s7 = inlined_call_operand.vmem [shape: bf16[128,64], index: 7, kind: input, shape index: {}]
  %s8 = inlined_call_operand.vmem [shape: bf16[1,64], index: 8, kind: input, shape index: {}]
  %s9 = inlined_call_operand.vmem [shape: bf16[64,128], index: 9, kind: input, shape index: {}]
  %s10 = inlined_call_operand.vmem [shape: bf16[1,128], index: 10, kind: input, shape index: {}]
  %s11 = inlined_call_operand.hbm [shape: bf16[8,128], index: 11, kind: output, shape index: {}]
  %s12 = sld [smem:[#allocation0]]
  $region66: #{tpu_custom_call.1} parent=0
    _
  %s14 = ssub.s32 1, %s12
  %s15 = scalar_select 0, %s14, %s12
  $region1: #{tpu_custom_call.1} parent=0
    #allocation2 [shape = 'u8[65536]{0}', space=vmem, size = 0x10000, scoped, tag = 'input window, operand 1, single buffered']
    #allocation3 [shape = 's32[1]{0}', space=sflag, size = 0x4, scoped, tag = 'scoped memory for tpu_custom_call.1']
    #allocation4 [shape = 's32[1]{0}', space=sflag, size = 0x4, scoped, tag = 'scoped memory for tpu_custom_call.1']
    #allocation5 [shape = 'u8[262144]{0}', space=vmem, size = 0x40000, scoped, tag = 'input window, operand 3, single buffered']
    #allocation6 [shape = 's32[1]{0}', space=sflag, size = 0x4, scoped, tag = 'scoped memory for tpu_custom_call.1']
    #allocation7 [shape = 'u8[65536]{0}', space=vmem, size = 0x10000, scoped, tag = 'input window, operand 5, single buffered']
    #allocation8 [shape = 'u8[2048]{0}', space=vmem, size = 0x800, scoped, tag = 'output window, operand 0, single buffered']
    %16 = vsyncpa [#allocation3], 0
    %17 = vsyncpa [#allocation6], 0
    %18 = vsyncpa [#allocation4], 0
    // Predicated region
    $region2: #{tpu_custom_call.1} parent=1 // pred_check
      _
    $region3: #{tpu_custom_call.1} parent=1 // pred_check_branch
      %20 = sbr.rel (0) target = $region5
    $region4: #{tpu_custom_call.1} parent=1 // pred_region
      _
    $region5: #{tpu_custom_call.1} parent=1 // pred_fallthru
      _
    // Predicated region
    $region6: #{tpu_custom_call.1} parent=1 // pred_check
      _
    $region7: #{tpu_custom_call.1} parent=1 // pred_check_branch
      %22 = sbr.rel (0) target = $region9
    $region8: #{tpu_custom_call.1} parent=1 // pred_region
      %s24 = ssub.s32 2048, 2048
      %25 = vsyncadd [#allocation3], %s24
      %s26 = sshll.u32 [#allocation2], 4
      %s27 = int_to_ptr.vmem [resolvable:$true] %s26
      %32 = dma.hbm_to_vmem [thread:$0]  %s1, 2048, %s27, [#allocation3], 256, 256, 16
    $region9: #{tpu_custom_call.1} parent=1 // pred_fallthru
      _
    // Predicated region
    $region10: #{tpu_custom_call.1} parent=1 // pred_check
      _
    $region11: #{tpu_custom_call.1} parent=1 // pred_check_branch
      %34 = sbr.rel (0) target = $region13
    $region12: #{tpu_custom_call.1} parent=1 // pred_region
      _
    $region13: #{tpu_custom_call.1} parent=1 // pred_fallthru
      _
    // Predicated region
    $region14: #{tpu_custom_call.1} parent=1 // pred_check
      _
    $region15: #{tpu_custom_call.1} parent=1 // pred_check_branch
      %36 = sbr.rel (0) target = $region17
    $region16: #{tpu_custom_call.1} parent=1 // pred_region
      %s38 = ssub.s32 8192, 8192
      %39 = vsyncadd [#allocation6], %s38
      %s40 = sshll.u32 [#allocation5], 4
      %s41 = int_to_ptr.vmem [resolvable:$true] %s40
      %46 = dma.hbm_to_vmem [thread:$0]  %s3, 8192, %s41, [#allocation6], 128, 128, 8
    $region17: #{tpu_custom_call.1} parent=1 // pred_fallthru
      _
    // Predicated region
    $region18: #{tpu_custom_call.1} parent=1 // pred_check
      _
    $region19: #{tpu_custom_call.1} parent=1 // pred_check_branch
      %48 = sbr.rel (0) target = $region21
    $region20: #{tpu_custom_call.1} parent=1 // pred_region
      _
    $region21: #{tpu_custom_call.1} parent=1 // pred_fallthru
      _
    // Predicated region
    $region22: #{tpu_custom_call.1} parent=1 // pred_check
      _
    $region23: #{tpu_custom_call.1} parent=1 // pred_check_branch
      %50 = sbr.rel (0) target = $region25
    $region24: #{tpu_custom_call.1} parent=1 // pred_region
      %s52 = ssub.s32 2048, 2048
      %53 = vsyncadd [#allocation6], %s52
      %s54 = sshll.u32 [#allocation7], 4
      %s55 = int_to_ptr.vmem [resolvable:$true] %s54
      %60 = dma.hbm_to_vmem [thread:$0]  %s5, 2048, %s55, [#allocation6], 64, 64, 4
    $region25: #{tpu_custom_call.1} parent=1 // pred_fallthru
      _
    // Predicated region
    $region26: #{tpu_custom_call.1} parent=1 // pred_check
      _
    $region27: #{tpu_custom_call.1} parent=1 // pred_check_branch
      %62 = sbr.rel (0) target = $region29
    $region28: #{tpu_custom_call.1} parent=1 // pred_region
      _
    $region29: #{tpu_custom_call.1} parent=1 // pred_fallthru
      _
    // Predicated region
    $region30: #{tpu_custom_call.1} parent=1 // pred_check
      _
    $region31: #{tpu_custom_call.1} parent=1 // pred_check_branch
      %64 = sbr.rel (0) target = $region33
    $region32: #{tpu_custom_call.1} parent=1 // pred_region
      _
    $region33: #{tpu_custom_call.1} parent=1 // pred_fallthru
      _
    // Predicated region
    $region34: #{tpu_custom_call.1} parent=1 // pred_check
      _
    $region35: #{tpu_custom_call.1} parent=1 // pred_check_branch
      %66 = sbr.rel (0) target = $region37
    $region36: #{tpu_custom_call.1} parent=1 // pred_region
      _
    $region37: #{tpu_custom_call.1} parent=1 // pred_fallthru
      _
    // Predicated region
    $region38: #{tpu_custom_call.1} parent=1 // pred_check
      _
    $region39: #{tpu_custom_call.1} parent=1 // pred_check_branch
      %68 = sbr.rel (0) target = $region41
    $region40: #{tpu_custom_call.1} parent=1 // pred_region
      _
    $region41: #{tpu_custom_call.1} parent=1 // pred_fallthru
      _
    // Predicated region
    $region42: #{tpu_custom_call.1} parent=1 // pred_check
      _
    $region43: #{tpu_custom_call.1} parent=1 // pred_check_branch
      %70 = sbr.rel (0) target = $region45
    $region44: #{tpu_custom_call.1} parent=1 // pred_region
      _
    $region45: #{tpu_custom_call.1} parent=1 // pred_fallthru
      _
    // Predicated region
    $region46: #{tpu_custom_call.1} parent=1 // pred_check
      _
    $region47: #{tpu_custom_call.1} parent=1 // pred_check_branch
      %72 = sbr.rel (0) target = $region49
    $region48: #{tpu_custom_call.1} parent=1 // pred_region
      %73 = dma.done [#allocation3], 2048
    $region49: #{tpu_custom_call.1} parent=1 // pred_fallthru
      _
    // Predicated region
    $region50: #{tpu_custom_call.1} parent=1 // pred_check
      _
    $region51: #{tpu_custom_call.1} parent=1 // pred_check_branch
      %75 = sbr.rel (0) target = $region53
    $region52: #{tpu_custom_call.1} parent=1 // pred_region
      %76 = dma.done [#allocation6], 8192
    $region53: #{tpu_custom_call.1} parent=1 // pred_fallthru
      _
    // Predicated region
    $region54: #{tpu_custom_call.1} parent=1 // pred_check
      _
    $region55: #{tpu_custom_call.1} parent=1 // pred_check_branch
      %78 = sbr.rel (0) target = $region57
    $region56: #{tpu_custom_call.1} parent=1 // pred_region
      %79 = dma.done [#allocation6], 2048
    $region57: #{tpu_custom_call.1} parent=1 // pred_fallthru
      _
    %v81 = vld [vmem:[%s0] sm:$0xf]
    %v82 = vld [vmem:[#allocation2] sm:$0xff]
    %v83 = vld [vmem:[#allocation2 + $0x8] sm:$0xff]
    %v84 = vld [vmem:[#allocation2 + $0x10] sm:$0xff]
    %v85 = vld [vmem:[#allocation2 + $0x18] sm:$0xff]
    %v86 = vld [vmem:[#allocation2 + $0x20] sm:$0xff]
    %v87 = vld [vmem:[#allocation2 + $0x28] sm:$0xff]
    %v88 = vld [vmem:[#allocation2 + $0x30] sm:$0xff]
    %v89 = vld [vmem:[#allocation2 + $0x38] sm:$0xff]
    %v90 = vld [vmem:[#allocation2 + $0x40] sm:$0xff]
    %v91 = vld [vmem:[#allocation2 + $0x48] sm:$0xff]
    %v92 = vld [vmem:[#allocation2 + $0x50] sm:$0xff]
    %v93 = vld [vmem:[#allocation2 + $0x58] sm:$0xff]
    %v94 = vld [vmem:[#allocation2 + $0x60] sm:$0xff]
    %v95 = vld [vmem:[#allocation2 + $0x68] sm:$0xff]
    %v96 = vld [vmem:[#allocation2 + $0x70] sm:$0xff]
    %v97 = vld [vmem:[#allocation2 + $0x78] sm:$0xff]
    %v114 = vunpack.c.l.b16 %v82
    %v115 = vunpack.c.h.b16 %v82
    %v116 = vunpack.c.l.b16 %v83
    %v117 = vunpack.c.h.b16 %v83
    %v118 = vunpack.c.l.b16 %v84
    %v119 = vunpack.c.h.b16 %v84
    %v120 = vunpack.c.l.b16 %v85
    %v121 = vunpack.c.h.b16 %v85
    %v122 = vunpack.c.l.b16 %v86
    %v123 = vunpack.c.h.b16 %v86
    %v124 = vunpack.c.l.b16 %v87
    %v125 = vunpack.c.h.b16 %v87
    %v126 = vunpack.c.l.b16 %v88
    %v127 = vunpack.c.h.b16 %v88
    %v128 = vunpack.c.l.b16 %v89
    %v129 = vunpack.c.h.b16 %v89
    %v130 = vunpack.c.l.b16 %v90
    %v131 = vunpack.c.h.b16 %v90
    %v132 = vunpack.c.l.b16 %v91
    %v133 = vunpack.c.h.b16 %v91
    %v134 = vunpack.c.l.b16 %v92
    %v135 = vunpack.c.h.b16 %v92
    %v136 = vunpack.c.l.b16 %v93
    %v137 = vunpack.c.h.b16 %v93
    %v138 = vunpack.c.l.b16 %v94
    %v139 = vunpack.c.h.b16 %v94
    %v140 = vunpack.c.l.b16 %v95
    %v141 = vunpack.c.h.b16 %v95
    %v142 = vunpack.c.l.b16 %v96
    %v143 = vunpack.c.h.b16 %v96
    %v144 = vunpack.c.l.b16 %v97
    %v145 = vunpack.c.h.b16 %v97
    %v146 = vpack.c.b16 %v118, %v114
    %v147 = vpack.c.b16 %v119, %v115
    %v148 = vpack.c.b16 %v120, %v116
    %v149 = vpack.c.b16 %v121, %v117
    %v150 = vpack.c.b16 %v126, %v122
    %v151 = vpack.c.b16 %v127, %v123
    %v152 = vpack.c.b16 %v128, %v124
    %v153 = vpack.c.b16 %v129, %v125
    %v154 = vpack.c.b16 %v134, %v130
    %v155 = vpack.c.b16 %v135, %v131
    %v156 = vpack.c.b16 %v136, %v132
    %v157 = vpack.c.b16 %v137, %v133
    %v158 = vpack.c.b16 %v142, %v138
    %v159 = vpack.c.b16 %v143, %v139
    %v160 = vpack.c.b16 %v144, %v140
    %v161 = vpack.c.b16 %v145, %v141
    %vm178 = vcmask 523264
    %v180 = vsel %vm178, %v81, 0
    %182 = vmatprep.subr.bf16.mxu0 %v147
    %183 = vmatpush1.bf16.msra.mxu0 %v146
    %184 = vmatprep.subr.bf16.mxu0 %v151
    %185 = vmatpush1.bf16.msra.mxu0 %v150
    %186 = vmatprep.subr.bf16.mxu0 %v155
    %187 = vmatpush1.bf16.msra.mxu0 %v154
    %188 = vmatprep.subr.bf16.mxu0 %v159
    %189 = vmatpush1.bf16.msra.mxu0 %v158
    %190 = vmatprep.subr.bf16.mxu0 0
    %191 = vmatpush1.bf16.msra.mxu0 0
    %192 = vmatprep.subr.bf16.mxu0 0
    %193 = vmatpush1.bf16.msra.mxu0 0
    %194 = vmatprep.subr.bf16.mxu0 0
    %195 = vmatpush1.bf16.msra.mxu0 0
    %196 = vmatprep.subr.bf16.mxu0 0
    %197 = vmatpush1.bf16.msra.mxu0 0
    %198 = vmatprep.subr.bf16.mxu0 0
    %199 = vmatpush1.bf16.msra.mxu0 0
    %200 = vmatprep.subr.bf16.mxu0 0
    %201 = vmatpush1.bf16.msra.mxu0 0
    %202 = vmatprep.subr.bf16.mxu0 0
    %203 = vmatpush1.bf16.msra.mxu0 0
    %204 = vmatprep.subr.bf16.mxu0 0
    %205 = vmatpush1.bf16.msra.mxu0 0
    %206 = vmatprep.subr.bf16.mxu0 0
    %207 = vmatpush1.bf16.msra.mxu0 0
    %208 = vmatprep.subr.bf16.mxu0 0
    %209 = vmatpush1.bf16.msra.mxu0 0
    %210 = vmatprep.subr.bf16.mxu0 0
    %211 = vmatpush1.bf16.msra.mxu0 0
    %212 = vmatprep.subr.bf16.mxu0 0
    %213 = vmatpush1.bf16.msra.mxu0 0
    %214 = vmatprep.mubr.bf16.mxu0 0
    %215 = vmatmul.mubr.bf16.gmra.mrb[0].mxu0 %v180
    %v216 = vpop.f32.mrb[0].mxu0
    %v217 = vadd.f32 0.0, %v216
    %v218 = vpop.f32.mrb[0].mxu0
    %v219 = vadd.f32 0.0, %v218
    %v220 = vpop.f32.mrb[0].mxu0
    %v221 = vpop.f32.mrb[0].mxu0
    %222 = vdwg.mxu0
    %223 = vmatprep.subr.bf16.mxu0 %v149
    %224 = vmatpush1.bf16.msra.mxu0 %v148
    %225 = vmatprep.subr.bf16.mxu0 %v153
    %226 = vmatpush1.bf16.msra.mxu0 %v152
    %227 = vmatprep.subr.bf16.mxu0 %v157
    %228 = vmatpush1.bf16.msra.mxu0 %v156
    %229 = vmatprep.subr.bf16.mxu0 %v161
    %230 = vmatpush1.bf16.msra.mxu0 %v160
    %231 = vmatprep.subr.bf16.mxu0 0
    %232 = vmatpush1.bf16.msra.mxu0 0
    %233 = vmatprep.subr.bf16.mxu0 0
    %234 = vmatpush1.bf16.msra.mxu0 0
    %235 = vmatprep.subr.bf16.mxu0 0
    %236 = vmatpush1.bf16.msra.mxu0 0
    %237 = vmatprep.subr.bf16.mxu0 0
    %238 = vmatpush1.bf16.msra.mxu0 0
    %239 = vmatprep.subr.bf16.mxu0 0
    %240 = vmatpush1.bf16.msra.mxu0 0
    %241 = vmatprep.subr.bf16.mxu0 0
    %242 = vmatpush1.bf16.msra.mxu0 0
    %243 = vmatprep.subr.bf16.mxu0 0
    %244 = vmatpush1.bf16.msra.mxu0 0
    %245 = vmatprep.subr.bf16.mxu0 0
    %246 = vmatpush1.bf16.msra.mxu0 0
    %247 = vmatprep.subr.bf16.mxu0 0
    %248 = vmatpush1.bf16.msra.mxu0 0
    %249 = vmatprep.subr.bf16.mxu0 0
    %250 = vmatpush1.bf16.msra.mxu0 0
    %251 = vmatprep.subr.bf16.mxu0 0
    %252 = vmatpush1.bf16.msra.mxu0 0
    %253 = vmatprep.subr.bf16.mxu0 0
    %254 = vmatpush1.bf16.msra.mxu0 0
    %255 = vmatprep.mubr.bf16.mxu0 0
    %256 = vmatmul.mubr.bf16.gmra.mrb[0].mxu0 %v180
    %v257 = vpop.f32.mrb[0].mxu0
    %v258 = vadd.f32 0.0, %v257
    %v259 = vpop.f32.mrb[0].mxu0
    %v260 = vadd.f32 0.0, %v259
    %v261 = vpop.f32.mrb[0].mxu0
    %v262 = vpop.f32.mrb[0].mxu0
    %263 = vdwg.mxu0
    %v264 = vpack.c.bf16 %v217, %v217
    %v265 = vpack.c.bf16 %v219, %v219
    %v266 = vpack.c.bf16 %v258, %v258
    %v267 = vpack.c.bf16 %v260, %v260
    %v268 = vld [vmem:[%s2] sm:$0xf]
    %v271 = vunpack.c.l.s4 1966171168
    %v272 = vunpack.c.0.s8 %v271
    %v273 = vlaneseq
    %v274 = vshrl.u32 %v273, 7
    %v275 = vsub.s32 %v272, %v274
    %v276 = vrot.slane %v268, %v275
    %v277 = vcombine.high %v276, %v276
    %v279 = vunpack.c.l.s4 1966171168
    %v280 = vunpack.c.0.s8 %v279
    %v281 = vlaneseq
    %v282 = vshrl.u32 %v281, 7
    %v283 = vsub.s32 %v280, %v282
    %v284 = vrot.slane %v276, %v283
    %v286 = vunpack.c.l.s4 1966171168
    %v287 = vunpack.c.0.s8 %v286
    %v288 = vlaneseq
    %v289 = vshrl.u32 %v288, 7
    %v290 = vsub.s32 %v287, %v289
    %v291 = vrot.slane %v277, %v290
    %v292 = vcombine.high %v284, %v284
    %v293 = vcombine.high %v291, %v291
    %v295 = vpack.i.b16 %v284, %v284
    %v297 = vlaneseq
    %v298 = vshrl.u32 %v297, 7
    %v299 = vsub.s32 0, %v298
    %v300 = vrot.slane %v295, %v299
    %v302 = vpack.i.b16 %v291, %v291
    %v304 = vlaneseq
    %v305 = vshrl.u32 %v304, 7
    %v306 = vsub.s32 0, %v305
    %v307 = vrot.slane %v302, %v306
    %v309 = vpack.i.b16 %v292, %v292
    %v311 = vlaneseq
    %v312 = vshrl.u32 %v311, 7
    %v313 = vsub.s32 0, %v312
    %v314 = vrot.slane %v309, %v313
    %v316 = vpack.i.b16 %v293, %v293
    %v318 = vlaneseq
    %v319 = vshrl.u32 %v318, 7
    %v320 = vsub.s32 0, %v319
    %v321 = vrot.slane %v316, %v320
    %v322 = vadd.bf16 %v264, %v300
    %v323 = vadd.bf16 %v265, %v307
    %v324 = vadd.bf16 %v266, %v314
    %v325 = vadd.bf16 %v267, %v321
    %v326 = vmax.bf16 %v322, 0
    %v327 = vmax.bf16 %v323, 0
    %v328 = vmax.bf16 %v324, 0
    %v329 = vmax.bf16 %v325, 0
    %v330 = vld [vmem:[#allocation5] sm:$0xff]
    %v331 = vld [vmem:[#allocation5 + $0x8] sm:$0xff]
    %v332 = vld [vmem:[#allocation5 + $0x10] sm:$0xff]
    %v333 = vld [vmem:[#allocation5 + $0x18] sm:$0xff]
    %v334 = vld [vmem:[#allocation5 + $0x20] sm:$0xff]
    %v335 = vld [vmem:[#allocation5 + $0x28] sm:$0xff]
    %v336 = vld [vmem:[#allocation5 + $0x30] sm:$0xff]
    %v337 = vld [vmem:[#allocation5 + $0x38] sm:$0xff]
    %v338 = vld [vmem:[#allocation5 + $0x40] sm:$0xff]
    %v339 = vld [vmem:[#allocation5 + $0x48] sm:$0xff]
    %v340 = vld [vmem:[#allocation5 + $0x50] sm:$0xff]
    %v341 = vld [vmem:[#allocation5 + $0x58] sm:$0xff]
    %v342 = vld [vmem:[#allocation5 + $0x60] sm:$0xff]
    %v343 = vld [vmem:[#allocation5 + $0x68] sm:$0xff]
    %v344 = vld [vmem:[#allocation5 + $0x70] sm:$0xff]
    %v345 = vld [vmem:[#allocation5 + $0x78] sm:$0xff]
    %v346 = vld [vmem:[#allocation5 + $0x80] sm:$0xff]
    %v347 = vld [vmem:[#allocation5 + $0x88] sm:$0xff]
    %v348 = vld [vmem:[#allocation5 + $0x90] sm:$0xff]
    %v349 = vld [vmem:[#allocation5 + $0x98] sm:$0xff]
    %v350 = vld [vmem:[#allocation5 + $0xa0] sm:$0xff]
    %v351 = vld [vmem:[#allocation5 + $0xa8] sm:$0xff]
    %v352 = vld [vmem:[#allocation5 + $0xb0] sm:$0xff]
    %v353 = vld [vmem:[#allocation5 + $0xb8] sm:$0xff]
    %v354 = vld [vmem:[#allocation5 + $0xc0] sm:$0xff]
    %v355 = vld [vmem:[#allocation5 + $0xc8] sm:$0xff]
    %v356 = vld [vmem:[#allocation5 + $0xd0] sm:$0xff]
    %v357 = vld [vmem:[#allocation5 + $0xd8] sm:$0xff]
    %v358 = vld [vmem:[#allocation5 + $0xe0] sm:$0xff]
    %v359 = vld [vmem:[#allocation5 + $0xe8] sm:$0xff]
    %v360 = vld [vmem:[#allocation5 + $0xf0] sm:$0xff]
    %v361 = vld [vmem:[#allocation5 + $0xf8] sm:$0xff]
    %v362 = vld [vmem:[#allocation5 + $0x100] sm:$0xff]
    %v363 = vld [vmem:[#allocation5 + $0x108] sm:$0xff]
    %v364 = vld [vmem:[#allocation5 + $0x110] sm:$0xff]
    %v365 = vld [vmem:[#allocation5 + $0x118] sm:$0xff]
    %v366 = vld [vmem:[#allocation5 + $0x120] sm:$0xff]
    %v367 = vld [vmem:[#allocation5 + $0x128] sm:$0xff]
    %v368 = vld [vmem:[#allocation5 + $0x130] sm:$0xff]
    %v369 = vld [vmem:[#allocation5 + $0x138] sm:$0xff]
    %v370 = vld [vmem:[#allocation5 + $0x140] sm:$0xff]
    %v371 = vld [vmem:[#allocation5 + $0x148] sm:$0xff]
    %v372 = vld [vmem:[#allocation5 + $0x150] sm:$0xff]
    %v373 = vld [vmem:[#allocation5 + $0x158] sm:$0xff]
    %v374 = vld [vmem:[#allocation5 + $0x160] sm:$0xff]
    %v375 = vld [vmem:[#allocation5 + $0x168] sm:$0xff]
    %v376 = vld [vmem:[#allocation5 + $0x170] sm:$0xff]
    %v377 = vld [vmem:[#allocation5 + $0x178] sm:$0xff]
    %v378 = vld [vmem:[#allocation5 + $0x180] sm:$0xff]
    %v379 = vld [vmem:[#allocation5 + $0x188] sm:$0xff]
    %v380 = vld [vmem:[#allocation5 + $0x190] sm:$0xff]
    %v381 = vld [vmem:[#allocation5 + $0x198] sm:$0xff]
    %v382 = vld [vmem:[#allocation5 + $0x1a0] sm:$0xff]
    %v383 = vld [vmem:[#allocation5 + $0x1a8] sm:$0xff]
    %v384 = vld [vmem:[#allocation5 + $0x1b0] sm:$0xff]
    %v385 = vld [vmem:[#allocation5 + $0x1b8] sm:$0xff]
    %v386 = vld [vmem:[#allocation5 + $0x1c0] sm:$0xff]
    %v387 = vld [vmem:[#allocation5 + $0x1c8] sm:$0xff]
    %v388 = vld [vmem:[#allocation5 + $0x1d0] sm:$0xff]
    %v389 = vld [vmem:[#allocation5 + $0x1d8] sm:$0xff]
    %v390 = vld [vmem:[#allocation5 + $0x1e0] sm:$0xff]
    %v391 = vld [vmem:[#allocation5 + $0x1e8] sm:$0xff]
    %v392 = vld [vmem:[#allocation5 + $0x1f0] sm:$0xff]
    %v393 = vld [vmem:[#allocation5 + $0x1f8] sm:$0xff]
    %v458 = vunpack.c.l.b16 %v330
    %v459 = vunpack.c.h.b16 %v330
    %v460 = vunpack.c.l.b16 %v331
    %v461 = vunpack.c.h.b16 %v331
    %v462 = vunpack.c.l.b16 %v332
    %v463 = vunpack.c.h.b16 %v332
    %v464 = vunpack.c.l.b16 %v333
    %v465 = vunpack.c.h.b16 %v333
    %v466 = vunpack.c.l.b16 %v334
    %v467 = vunpack.c.h.b16 %v334
    %v468 = vunpack.c.l.b16 %v335
    %v469 = vunpack.c.h.b16 %v335
    %v470 = vunpack.c.l.b16 %v336
    %v471 = vunpack.c.h.b16 %v336
    %v472 = vunpack.c.l.b16 %v337
    %v473 = vunpack.c.h.b16 %v337
    %v474 = vunpack.c.l.b16 %v338
    %v475 = vunpack.c.h.b16 %v338
    %v476 = vunpack.c.l.b16 %v339
    %v477 = vunpack.c.h.b16 %v339
    %v478 = vunpack.c.l.b16 %v340
    %v479 = vunpack.c.h.b16 %v340
    %v480 = vunpack.c.l.b16 %v341
    %v481 = vunpack.c.h.b16 %v341
    %v482 = vunpack.c.l.b16 %v342
    %v483 = vunpack.c.h.b16 %v342
    %v484 = vunpack.c.l.b16 %v343
    %v485 = vunpack.c.h.b16 %v343
    %v486 = vunpack.c.l.b16 %v344
    %v487 = vunpack.c.h.b16 %v344
    %v488 = vunpack.c.l.b16 %v345
    %v489 = vunpack.c.h.b16 %v345
    %v490 = vunpack.c.l.b16 %v346
    %v491 = vunpack.c.h.b16 %v346
    %v492 = vunpack.c.l.b16 %v347
    %v493 = vunpack.c.h.b16 %v347
    %v494 = vunpack.c.l.b16 %v348
    %v495 = vunpack.c.h.b16 %v348
    %v496 = vunpack.c.l.b16 %v349
    %v497 = vunpack.c.h.b16 %v349
    %v498 = vunpack.c.l.b16 %v350
    %v499 = vunpack.c.h.b16 %v350
    %v500 = vunpack.c.l.b16 %v351
    %v501 = vunpack.c.h.b16 %v351
    %v502 = vunpack.c.l.b16 %v352
    %v503 = vunpack.c.h.b16 %v352
    %v504 = vunpack.c.l.b16 %v353
    %v505 = vunpack.c.h.b16 %v353
    %v506 = vunpack.c.l.b16 %v354
    %v507 = vunpack.c.h.b16 %v354
    %v508 = vunpack.c.l.b16 %v355
    %v509 = vunpack.c.h.b16 %v355
    %v510 = vunpack.c.l.b16 %v356
    %v511 = vunpack.c.h.b16 %v356
    %v512 = vunpack.c.l.b16 %v357
    %v513 = vunpack.c.h.b16 %v357
    %v514 = vunpack.c.l.b16 %v358
    %v515 = vunpack.c.h.b16 %v358
    %v516 = vunpack.c.l.b16 %v359
    %v517 = vunpack.c.h.b16 %v359
    %v518 = vunpack.c.l.b16 %v360
    %v519 = vunpack.c.h.b16 %v360
    %v520 = vunpack.c.l.b16 %v361
    %v521 = vunpack.c.h.b16 %v361
    %v522 = vunpack.c.l.b16 %v362
    %v523 = vunpack.c.h.b16 %v362
    %v524 = vunpack.c.l.b16 %v363
    %v525 = vunpack.c.h.b16 %v363
    %v526 = vunpack.c.l.b16 %v364
    %v527 = vunpack.c.h.b16 %v364
    %v528 = vunpack.c.l.b16 %v365
    %v529 = vunpack.c.h.b16 %v365
    %v530 = vunpack.c.l.b16 %v366
    %v531 = vunpack.c.h.b16 %v366
    %v532 = vunpack.c.l.b16 %v367
    %v533 = vunpack.c.h.b16 %v367
    %v534 = vunpack.c.l.b16 %v368
    %v535 = vunpack.c.h.b16 %v368
    %v536 = vunpack.c.l.b16 %v369
    %v537 = vunpack.c.h.b16 %v369
    %v538 = vunpack.c.l.b16 %v370
    %v539 = vunpack.c.h.b16 %v370
    %v540 = vunpack.c.l.b16 %v371
    %v541 = vunpack.c.h.b16 %v371
    %v542 = vunpack.c.l.b16 %v372
    %v543 = vunpack.c.h.b16 %v372
    %v544 = vunpack.c.l.b16 %v373
    %v545 = vunpack.c.h.b16 %v373
    %v546 = vunpack.c.l.b16 %v374
    %v547 = vunpack.c.h.b16 %v374
    %v548 = vunpack.c.l.b16 %v375
    %v549 = vunpack.c.h.b16 %v375
    %v550 = vunpack.c.l.b16 %v376
    %v551 = vunpack.c.h.b16 %v376
    %v552 = vunpack.c.l.b16 %v377
    %v553 = vunpack.c.h.b16 %v377
    %v554 = vunpack.c.l.b16 %v378
    %v555 = vunpack.c.h.b16 %v378
    %v556 = vunpack.c.l.b16 %v379
    %v557 = vunpack.c.h.b16 %v379
    %v558 = vunpack.c.l.b16 %v380
    %v559 = vunpack.c.h.b16 %v380
    %v560 = vunpack.c.l.b16 %v381
    %v561 = vunpack.c.h.b16 %v381
    %v562 = vunpack.c.l.b16 %v382
    %v563 = vunpack.c.h.b16 %v382
    %v564 = vunpack.c.l.b16 %v383
    %v565 = vunpack.c.h.b16 %v383
    %v566 = vunpack.c.l.b16 %v384
    %v567 = vunpack.c.h.b16 %v384
    %v568 = vunpack.c.l.b16 %v385
    %v569 = vunpack.c.h.b16 %v385
    %v570 = vunpack.c.l.b16 %v386
    %v571 = vunpack.c.h.b16 %v386
    %v572 = vunpack.c.l.b16 %v387
    %v573 = vunpack.c.h.b16 %v387
    %v574 = vunpack.c.l.b16 %v388
    %v575 = vunpack.c.h.b16 %v388
    %v576 = vunpack.c.l.b16 %v389
    %v577 = vunpack.c.h.b16 %v389
    %v578 = vunpack.c.l.b16 %v390
    %v579 = vunpack.c.h.b16 %v390
    %v580 = vunpack.c.l.b16 %v391
    %v581 = vunpack.c.h.b16 %v391
    %v582 = vunpack.c.l.b16 %v392
    %v583 = vunpack.c.h.b16 %v392
    %v584 = vunpack.c.l.b16 %v393
    %v585 = vunpack.c.h.b16 %v393
    %v586 = vpack.c.b16 %v460, %v458
    %v587 = vpack.c.b16 %v461, %v459
    %v588 = vpack.c.b16 %v464, %v462
    %v589 = vpack.c.b16 %v465, %v463
    %v590 = vpack.c.b16 %v468, %v466
    %v591 = vpack.c.b16 %v469, %v467
    %v592 = vpack.c.b16 %v472, %v470
    %v593 = vpack.c.b16 %v473, %v471
    %v594 = vpack.c.b16 %v476, %v474
    %v595 = vpack.c.b16 %v477, %v475
    %v596 = vpack.c.b16 %v480, %v478
    %v597 = vpack.c.b16 %v481, %v479
    %v598 = vpack.c.b16 %v484, %v482
    %v599 = vpack.c.b16 %v485, %v483
    %v600 = vpack.c.b16 %v488, %v486
    %v601 = vpack.c.b16 %v489, %v487
    %v602 = vpack.c.b16 %v492, %v490
    %v603 = vpack.c.b16 %v493, %v491
    %v604 = vpack.c.b16 %v496, %v494
    %v605 = vpack.c.b16 %v497, %v495
    %v606 = vpack.c.b16 %v500, %v498
    %v607 = vpack.c.b16 %v501, %v499
    %v608 = vpack.c.b16 %v504, %v502
    %v609 = vpack.c.b16 %v505, %v503
    %v610 = vpack.c.b16 %v508, %v506
    %v611 = vpack.c.b16 %v509, %v507
    %v612 = vpack.c.b16 %v512, %v510
    %v613 = vpack.c.b16 %v513, %v511
    %v614 = vpack.c.b16 %v516, %v514
    %v615 = vpack.c.b16 %v517, %v515
    %v616 = vpack.c.b16 %v520, %v518
    %v617 = vpack.c.b16 %v521, %v519
    %v618 = vpack.c.b16 %v524, %v522
    %v619 = vpack.c.b16 %v525, %v523
    %v620 = vpack.c.b16 %v528, %v526
    %v621 = vpack.c.b16 %v529, %v527
    %v622 = vpack.c.b16 %v532, %v530
    %v623 = vpack.c.b16 %v533, %v531
    %v624 = vpack.c.b16 %v536, %v534
    %v625 = vpack.c.b16 %v537, %v535
    %v626 = vpack.c.b16 %v540, %v538
    %v627 = vpack.c.b16 %v541, %v539
    %v628 = vpack.c.b16 %v544, %v542
    %v629 = vpack.c.b16 %v545, %v543
    %v630 = vpack.c.b16 %v548, %v546
    %v631 = vpack.c.b16 %v549, %v547
    %v632 = vpack.c.b16 %v552, %v550
    %v633 = vpack.c.b16 %v553, %v551
    %v634 = vpack.c.b16 %v556, %v554
    %v635 = vpack.c.b16 %v557, %v555
    %v636 = vpack.c.b16 %v560, %v558
    %v637 = vpack.c.b16 %v561, %v559
    %v638 = vpack.c.b16 %v564, %v562
    %v639 = vpack.c.b16 %v565, %v563
    %v640 = vpack.c.b16 %v568, %v566
    %v641 = vpack.c.b16 %v569, %v567
    %v642 = vpack.c.b16 %v572, %v570
    %v643 = vpack.c.b16 %v573, %v571
    %v644 = vpack.c.b16 %v576, %v574
    %v645 = vpack.c.b16 %v577, %v575
    %v646 = vpack.c.b16 %v580, %v578
    %v647 = vpack.c.b16 %v581, %v579
    %v648 = vpack.c.b16 %v584, %v582
    %v649 = vpack.c.b16 %v585, %v583
    %714 = vmatprep.subr.bf16.mxu0 %v587
    %715 = vmatpush1.bf16.msra.mxu0 %v586
    %716 = vmatprep.subr.bf16.mxu0 %v589
    %717 = vmatpush1.bf16.msra.mxu0 %v588
    %718 = vmatprep.subr.bf16.mxu0 %v591
    %719 = vmatpush1.bf16.msra.mxu0 %v590
    %720 = vmatprep.subr.bf16.mxu0 %v593
    %721 = vmatpush1.bf16.msra.mxu0 %v592
    %722 = vmatprep.subr.bf16.mxu0 %v595
    %723 = vmatpush1.bf16.msra.mxu0 %v594
    %724 = vmatprep.subr.bf16.mxu0 %v597
    %725 = vmatpush1.bf16.msra.mxu0 %v596
    %726 = vmatprep.subr.bf16.mxu0 %v599
    %727 = vmatpush1.bf16.msra.mxu0 %v598
    %728 = vmatprep.subr.bf16.mxu0 %v601
    %729 = vmatpush1.bf16.msra.mxu0 %v600
    %730 = vmatprep.subr.bf16.mxu0 %v603
    %731 = vmatpush1.bf16.msra.mxu0 %v602
    %732 = vmatprep.subr.bf16.mxu0 %v605
    %733 = vmatpush1.bf16.msra.mxu0 %v604
    %734 = vmatprep.subr.bf16.mxu0 %v607
    %735 = vmatpush1.bf16.msra.mxu0 %v606
    %736 = vmatprep.subr.bf16.mxu0 %v609
    %737 = vmatpush1.bf16.msra.mxu0 %v608
    %738 = vmatprep.subr.bf16.mxu0 %v611
    %739 = vmatpush1.bf16.msra.mxu0 %v610
    %740 = vmatprep.subr.bf16.mxu0 %v613
    %741 = vmatpush1.bf16.msra.mxu0 %v612
    %742 = vmatprep.subr.bf16.mxu0 %v615
    %743 = vmatpush1.bf16.msra.mxu0 %v614
    %744 = vmatprep.subr.bf16.mxu0 %v617
    %745 = vmatpush1.bf16.msra.mxu0 %v616
    %746 = vmatprep.mubr.bf16.mxu0 %v327
    %747 = vmatmul.mubr.bf16.gmra.mrb[0].mxu0 %v326
    %v748 = vpop.f32.mrb[0].mxu0
    %v749 = vadd.f32 0.0, %v748
    %v750 = vpop.f32.mrb[0].mxu0
    %v751 = vadd.f32 0.0, %v750
    %v752 = vpop.f32.mrb[0].mxu0
    %v753 = vpop.f32.mrb[0].mxu0
    %754 = vdwg.mxu0
    %755 = vmatprep.subr.bf16.mxu0 %v619
    %756 = vmatpush1.bf16.msra.mxu0 %v618
    %757 = vmatprep.subr.bf16.mxu0 %v621
    %758 = vmatpush1.bf16.msra.mxu0 %v620
    %759 = vmatprep.subr.bf16.mxu0 %v623
    %760 = vmatpush1.bf16.msra.mxu0 %v622
    %761 = vmatprep.subr.bf16.mxu0 %v625
    %762 = vmatpush1.bf16.msra.mxu0 %v624
    %763 = vmatprep.subr.bf16.mxu0 %v627
    %764 = vmatpush1.bf16.msra.mxu0 %v626
    %765 = vmatprep.subr.bf16.mxu0 %v629
    %766 = vmatpush1.bf16.msra.mxu0 %v628
    %767 = vmatprep.subr.bf16.mxu0 %v631
    %768 = vmatpush1.bf16.msra.mxu0 %v630
    %769 = vmatprep.subr.bf16.mxu0 %v633
    %770 = vmatpush1.bf16.msra.mxu0 %v632
    %771 = vmatprep.subr.bf16.mxu0 %v635
    %772 = vmatpush1.bf16.msra.mxu0 %v634
    %773 = vmatprep.subr.bf16.mxu0 %v637
    %774 = vmatpush1.bf16.msra.mxu0 %v636
    %775 = vmatprep.subr.bf16.mxu0 %v639
    %776 = vmatpush1.bf16.msra.mxu0 %v638
    %777 = vmatprep.subr.bf16.mxu0 %v641
    %778 = vmatpush1.bf16.msra.mxu0 %v640
    %779 = vmatprep.subr.bf16.mxu0 %v643
    %780 = vmatpush1.bf16.msra.mxu0 %v642
    %781 = vmatprep.subr.bf16.mxu0 %v645
    %782 = vmatpush1.bf16.msra.mxu0 %v644
    %783 = vmatprep.subr.bf16.mxu0 %v647
    %784 = vmatpush1.bf16.msra.mxu0 %v646
    %785 = vmatprep.subr.bf16.mxu0 %v649
    %786 = vmatpush1.bf16.msra.mxu0 %v648
    %787 = vmatprep.mubr.bf16.mxu0 %v329
    %788 = vmatmul.mubr.bf16.gmra.mrb[0].mxu0 %v328
    %v789 = vpop.f32.mrb[0].mxu0
    %v790 = vadd.f32 %v749, %v789
    %v791 = vpop.f32.mrb[0].mxu0
    %v792 = vadd.f32 %v751, %v791
    %v793 = vpop.f32.mrb[0].mxu0
    %v794 = vpop.f32.mrb[0].mxu0
    %795 = vdwg.mxu0
    %v796 = vpack.c.bf16 %v790, %v790
    %v797 = vpack.c.bf16 %v792, %v792
    %v798 = vld [vmem:[%s4] sm:$0x3]
    %v801 = vunpack.c.l.s4 1966171168
    %v802 = vunpack.c.0.s8 %v801
    %v803 = vlaneseq
    %v804 = vshrl.u32 %v803, 7
    %v805 = vsub.s32 %v802, %v804
    %v806 = vrot.slane %v798, %v805
    %v807 = vcombine.high %v806, %v806
    %v809 = vunpack.c.l.s4 1966171168
    %v810 = vunpack.c.0.s8 %v809
    %v811 = vlaneseq
    %v812 = vshrl.u32 %v811, 7
    %v813 = vsub.s32 %v810, %v812
    %v814 = vrot.slane %v806, %v813
    %v816 = vunpack.c.l.s4 1966171168
    %v817 = vunpack.c.0.s8 %v816
    %v818 = vlaneseq
    %v819 = vshrl.u32 %v818, 7
    %v820 = vsub.s32 %v817, %v819
    %v821 = vrot.slane %v807, %v820
    %v823 = vpack.i.b16 %v814, %v814
    %v825 = vlaneseq
    %v826 = vshrl.u32 %v825, 7
    %v827 = vsub.s32 0, %v826
    %v828 = vrot.slane %v823, %v827
    %v830 = vpack.i.b16 %v821, %v821
    %v832 = vlaneseq
    %v833 = vshrl.u32 %v832, 7
    %v834 = vsub.s32 0, %v833
    %v835 = vrot.slane %v830, %v834
    %v836 = vadd.bf16 %v796, %v828
    %v837 = vadd.bf16 %v797, %v835
    %v838 = vmax.bf16 %v836, 0
    %v839 = vmax.bf16 %v837, 0
    %v840 = vld [vmem:[#allocation7] sm:$0xf]
    %v841 = vld [vmem:[#allocation7 + $0x4] sm:$0xf]
    %v842 = vld [vmem:[#allocation7 + $0x8] sm:$0xf]
    %v843 = vld [vmem:[#allocation7 + $0xc] sm:$0xf]
    %v844 = vld [vmem:[#allocation7 + $0x10] sm:$0xf]
    %v845 = vld [vmem:[#allocation7 + $0x14] sm:$0xf]
    %v846 = vld [vmem:[#allocation7 + $0x18] sm:$0xf]
    %v847 = vld [vmem:[#allocation7 + $0x1c] sm:$0xf]
    %v848 = vld [vmem:[#allocation7 + $0x20] sm:$0xf]
    %v849 = vld [vmem:[#allocation7 + $0x24] sm:$0xf]
    %v850 = vld [vmem:[#allocation7 + $0x28] sm:$0xf]
    %v851 = vld [vmem:[#allocation7 + $0x2c] sm:$0xf]
    %v852 = vld [vmem:[#allocation7 + $0x30] sm:$0xf]
    %v853 = vld [vmem:[#allocation7 + $0x34] sm:$0xf]
    %v854 = vld [vmem:[#allocation7 + $0x38] sm:$0xf]
    %v855 = vld [vmem:[#allocation7 + $0x3c] sm:$0xf]
    %v856 = vld [vmem:[#allocation7 + $0x40] sm:$0xf]
    %v857 = vld [vmem:[#allocation7 + $0x44] sm:$0xf]
    %v858 = vld [vmem:[#allocation7 + $0x48] sm:$0xf]
    %v859 = vld [vmem:[#allocation7 + $0x4c] sm:$0xf]
    %v860 = vld [vmem:[#allocation7 + $0x50] sm:$0xf]
    %v861 = vld [vmem:[#allocation7 + $0x54] sm:$0xf]
    %v862 = vld [vmem:[#allocation7 + $0x58] sm:$0xf]
    %v863 = vld [vmem:[#allocation7 + $0x5c] sm:$0xf]
    %v864 = vld [vmem:[#allocation7 + $0x60] sm:$0xf]
    %v865 = vld [vmem:[#allocation7 + $0x64] sm:$0xf]
    %v866 = vld [vmem:[#allocation7 + $0x68] sm:$0xf]
    %v867 = vld [vmem:[#allocation7 + $0x6c] sm:$0xf]
    %v868 = vld [vmem:[#allocation7 + $0x70] sm:$0xf]
    %v869 = vld [vmem:[#allocation7 + $0x74] sm:$0xf]
    %v870 = vld [vmem:[#allocation7 + $0x78] sm:$0xf]
    %v871 = vld [vmem:[#allocation7 + $0x7c] sm:$0xf]
    %v904 = vunpack.c.l.b16 %v840
    %v905 = vunpack.c.l.b16 %v841
    %v906 = vunpack.c.l.b16 %v842
    %v907 = vunpack.c.l.b16 %v843
    %v908 = vunpack.c.l.b16 %v844
    %v909 = vunpack.c.l.b16 %v845
    %v910 = vunpack.c.l.b16 %v846
    %v911 = vunpack.c.l.b16 %v847
    %v912 = vunpack.c.l.b16 %v848
    %v913 = vunpack.c.l.b16 %v849
    %v914 = vunpack.c.l.b16 %v850
    %v915 = vunpack.c.l.b16 %v851
    %v916 = vunpack.c.l.b16 %v852
    %v917 = vunpack.c.l.b16 %v853
    %v918 = vunpack.c.l.b16 %v854
    %v919 = vunpack.c.l.b16 %v855
    %v920 = vunpack.c.l.b16 %v856
    %v921 = vunpack.c.l.b16 %v857
    %v922 = vunpack.c.l.b16 %v858
    %v923 = vunpack.c.l.b16 %v859
    %v924 = vunpack.c.l.b16 %v860
    %v925 = vunpack.c.l.b16 %v861
    %v926 = vunpack.c.l.b16 %v862
    %v927 = vunpack.c.l.b16 %v863
    %v928 = vunpack.c.l.b16 %v864
    %v929 = vunpack.c.l.b16 %v865
    %v930 = vunpack.c.l.b16 %v866
    %v931 = vunpack.c.l.b16 %v867
    %v932 = vunpack.c.l.b16 %v868
    %v933 = vunpack.c.l.b16 %v869
    %v934 = vunpack.c.l.b16 %v870
    %v935 = vunpack.c.l.b16 %v871
    %v936 = vpack.c.b16 %v905, %v904
    %v937 = vpack.c.b16 %v907, %v906
    %v938 = vpack.c.b16 %v909, %v908
    %v939 = vpack.c.b16 %v911, %v910
    %v940 = vpack.c.b16 %v913, %v912
    %v941 = vpack.c.b16 %v915, %v914
    %v942 = vpack.c.b16 %v917, %v916
    %v943 = vpack.c.b16 %v919, %v918
    %v944 = vpack.c.b16 %v921, %v920
    %v945 = vpack.c.b16 %v923, %v922
    %v946 = vpack.c.b16 %v925, %v924
    %v947 = vpack.c.b16 %v927, %v926
    %v948 = vpack.c.b16 %v929, %v928
    %v949 = vpack.c.b16 %v931, %v930
    %v950 = vpack.c.b16 %v933, %v932
    %v951 = vpack.c.b16 %v935, %v934
    %968 = vmatprep.subr.bf16.mxu0 0
    %969 = vmatpush1.bf16.msra.mxu0 %v936
    %970 = vmatprep.subr.bf16.mxu0 0
    %971 = vmatpush1.bf16.msra.mxu0 %v937
    %972 = vmatprep.subr.bf16.mxu0 0
    %973 = vmatpush1.bf16.msra.mxu0 %v938
    %974 = vmatprep.subr.bf16.mxu0 0
    %975 = vmatpush1.bf16.msra.mxu0 %v939
    %976 = vmatprep.subr.bf16.mxu0 0
    %977 = vmatpush1.bf16.msra.mxu0 %v940
    %978 = vmatprep.subr.bf16.mxu0 0
    %979 = vmatpush1.bf16.msra.mxu0 %v941
    %980 = vmatprep.subr.bf16.mxu0 0
    %981 = vmatpush1.bf16.msra.mxu0 %v942
    %982 = vmatprep.subr.bf16.mxu0 0
    %983 = vmatpush1.bf16.msra.mxu0 %v943
    %984 = vmatprep.subr.bf16.mxu0 0
    %985 = vmatpush1.bf16.msra.mxu0 %v944
    %986 = vmatprep.subr.bf16.mxu0 0
    %987 = vmatpush1.bf16.msra.mxu0 %v945
    %988 = vmatprep.subr.bf16.mxu0 0
    %989 = vmatpush1.bf16.msra.mxu0 %v946
    %990 = vmatprep.subr.bf16.mxu0 0
    %991 = vmatpush1.bf16.msra.mxu0 %v947
    %992 = vmatprep.subr.bf16.mxu0 0
    %993 = vmatpush1.bf16.msra.mxu0 %v948
    %994 = vmatprep.subr.bf16.mxu0 0
    %995 = vmatpush1.bf16.msra.mxu0 %v949
    %996 = vmatprep.subr.bf16.mxu0 0
    %997 = vmatpush1.bf16.msra.mxu0 %v950
    %998 = vmatprep.subr.bf16.mxu0 0
    %999 = vmatpush1.bf16.msra.mxu0 %v951
    %1000 = vmatprep.mubr.bf16.mxu0 %v839
    %1001 = vmatmul.mubr.bf16.gmra.mrb[0].mxu0 %v838
    %v1002 = vpop.f32.mrb[0].mxu0
    %v1003 = vadd.f32 0.0, %v1002
    %v1004 = vpop.f32.mrb[0].mxu0
    %v1005 = vpop.f32.mrb[0].mxu0
    %v1006 = vpop.f32.mrb[0].mxu0
    %1007 = vdwg.mxu0
    %v1008 = vpack.c.bf16 %v1003, %v1003
    %v1009 = vld [vmem:[%s6] sm:$0x1]
    %v1011 = vpack.i.b16 %v1009, %v1009
    %v1013 = vlaneseq
    %v1014 = vshrl.u32 %v1013, 7
    %v1015 = vsub.s32 0, %v1014
    %v1016 = vrot.slane %v1011, %v1015
    %v1017 = vadd.bf16 %v1008, %v1016
    %v1018 = vmax.bf16 %v1017, 0
    %v1019 = vld [vmem:[%s7] sm:$0xf]
    %v1020 = vld [vmem:[%s7 + $0x4] sm:$0xf]
    %v1021 = vld [vmem:[%s7 + $0x8] sm:$0xf]
    %v1022 = vld [vmem:[%s7 + $0xc] sm:$0xf]
    %v1023 = vld [vmem:[%s7 + $0x10] sm:$0xf]
    %v1024 = vld [vmem:[%s7 + $0x14] sm:$0xf]
    %v1025 = vld [vmem:[%s7 + $0x18] sm:$0xf]
    %v1026 = vld [vmem:[%s7 + $0x1c] sm:$0xf]
    %v1027 = vld [vmem:[%s7 + $0x20] sm:$0xf]
    %v1028 = vld [vmem:[%s7 + $0x24] sm:$0xf]
    %v1029 = vld [vmem:[%s7 + $0x28] sm:$0xf]
    %v1030 = vld [vmem:[%s7 + $0x2c] sm:$0xf]
    %v1031 = vld [vmem:[%s7 + $0x30] sm:$0xf]
    %v1032 = vld [vmem:[%s7 + $0x34] sm:$0xf]
    %v1033 = vld [vmem:[%s7 + $0x38] sm:$0xf]
    %v1034 = vld [vmem:[%s7 + $0x3c] sm:$0xf]
    %v1051 = vunpack.c.l.b16 %v1019
    %v1052 = vunpack.c.l.b16 %v1020
    %v1053 = vunpack.c.l.b16 %v1021
    %v1054 = vunpack.c.l.b16 %v1022
    %v1055 = vunpack.c.l.b16 %v1023
    %v1056 = vunpack.c.l.b16 %v1024
    %v1057 = vunpack.c.l.b16 %v1025
    %v1058 = vunpack.c.l.b16 %v1026
    %v1059 = vunpack.c.l.b16 %v1027
    %v1060 = vunpack.c.l.b16 %v1028
    %v1061 = vunpack.c.l.b16 %v1029
    %v1062 = vunpack.c.l.b16 %v1030
    %v1063 = vunpack.c.l.b16 %v1031
    %v1064 = vunpack.c.l.b16 %v1032
    %v1065 = vunpack.c.l.b16 %v1033
    %v1066 = vunpack.c.l.b16 %v1034
    %v1067 = vpack.c.b16 %v1052, %v1051
    %v1068 = vpack.c.b16 %v1054, %v1053
    %v1069 = vpack.c.b16 %v1056, %v1055
    %v1070 = vpack.c.b16 %v1058, %v1057
    %v1071 = vpack.c.b16 %v1060, %v1059
    %v1072 = vpack.c.b16 %v1062, %v1061
    %v1073 = vpack.c.b16 %v1064, %v1063
    %v1074 = vpack.c.b16 %v1066, %v1065
    %1083 = vmatprep.subr.bf16.mxu0 0
    %1084 = vmatpush1.bf16.msra.mxu0 %v1067
    %1085 = vmatprep.subr.bf16.mxu0 0
    %1086 = vmatpush1.bf16.msra.mxu0 %v1068
    %1087 = vmatprep.subr.bf16.mxu0 0
    %1088 = vmatpush1.bf16.msra.mxu0 %v1069
    %1089 = vmatprep.subr.bf16.mxu0 0
    %1090 = vmatpush1.bf16.msra.mxu0 %v1070
    %1091 = vmatprep.subr.bf16.mxu0 0
    %1092 = vmatpush1.bf16.msra.mxu0 %v1071
    %1093 = vmatprep.subr.bf16.mxu0 0
    %1094 = vmatpush1.bf16.msra.mxu0 %v1072
    %1095 = vmatprep.subr.bf16.mxu0 0
    %1096 = vmatpush1.bf16.msra.mxu0 %v1073
    %1097 = vmatprep.subr.bf16.mxu0 0
    %1098 = vmatpush1.bf16.msra.mxu0 %v1074
    %1099 = vmatprep.subr.bf16.mxu0 0
    %1100 = vmatpush1.bf16.msra.mxu0 0
    %1101 = vmatprep.subr.bf16.mxu0 0
    %1102 = vmatpush1.bf16.msra.mxu0 0
    %1103 = vmatprep.subr.bf16.mxu0 0
    %1104 = vmatpush1.bf16.msra.mxu0 0
    %1105 = vmatprep.subr.bf16.mxu0 0
    %1106 = vmatpush1.bf16.msra.mxu0 0
    %1107 = vmatprep.subr.bf16.mxu0 0
    %1108 = vmatpush1.bf16.msra.mxu0 0
    %1109 = vmatprep.subr.bf16.mxu0 0
    %1110 = vmatpush1.bf16.msra.mxu0 0
    %1111 = vmatprep.subr.bf16.mxu0 0
    %1112 = vmatpush1.bf16.msra.mxu0 0
    %1113 = vmatprep.subr.bf16.mxu0 0
    %1114 = vmatpush1.bf16.msra.mxu0 0
    %1115 = vmatprep.mubr.bf16.mxu0 0
    %1116 = vmatmul.mubr.bf16.gmra.mrb[0].mxu0 %v1018
    %v1117 = vpop.f32.mrb[0].mxu0
    %v1118 = vadd.f32 0.0, %v1117
    %v1119 = vpop.f32.mrb[0].mxu0
    %v1120 = vpop.f32.mrb[0].mxu0
    %v1121 = vpop.f32.mrb[0].mxu0
    %1122 = vdwg.mxu0
    %v1123 = vpack.c.bf16 %v1118, %v1118
    %v1124 = vld [vmem:[%s8] sm:$0x1]
    %v1126 = vpack.i.b16 %v1124, %v1124
    %v1128 = vlaneseq
    %v1129 = vshrl.u32 %v1128, 7
    %v1130 = vsub.s32 0, %v1129
    %v1131 = vrot.slane %v1126, %v1130
    %v1132 = vadd.bf16 %v1123, %v1131
    %v1133 = vmax.bf16 %v1132, 0
    %v1134 = vld [vmem:[%s9] sm:$0xf]
    %v1135 = vld [vmem:[%s9 + $0x4] sm:$0xf]
    %v1136 = vld [vmem:[%s9 + $0x8] sm:$0xf]
    %v1137 = vld [vmem:[%s9 + $0xc] sm:$0xf]
    %v1138 = vld [vmem:[%s9 + $0x10] sm:$0xf]
    %v1139 = vld [vmem:[%s9 + $0x14] sm:$0xf]
    %v1140 = vld [vmem:[%s9 + $0x18] sm:$0xf]
    %v1141 = vld [vmem:[%s9 + $0x1c] sm:$0xf]
    %v1150 = vunpack.c.l.b16 %v1134
    %v1151 = vunpack.c.l.b16 %v1135
    %v1152 = vunpack.c.l.b16 %v1136
    %v1153 = vunpack.c.l.b16 %v1137
    %v1154 = vunpack.c.l.b16 %v1138
    %v1155 = vunpack.c.l.b16 %v1139
    %v1156 = vunpack.c.l.b16 %v1140
    %v1157 = vunpack.c.l.b16 %v1141
    %v1158 = vpack.c.b16 %v1151, %v1150
    %v1159 = vpack.c.b16 %v1153, %v1152
    %v1160 = vpack.c.b16 %v1155, %v1154
    %v1161 = vpack.c.b16 %v1157, %v1156
    %v1167 = vsel %vm178, %v1133, 0
    %1169 = vmatprep.subr.bf16.mxu0 0
    %1170 = vmatpush1.bf16.msra.mxu0 %v1158
    %1171 = vmatprep.subr.bf16.mxu0 0
    %1172 = vmatpush1.bf16.msra.mxu0 %v1159
    %1173 = vmatprep.subr.bf16.mxu0 0
    %1174 = vmatpush1.bf16.msra.mxu0 %v1160
    %1175 = vmatprep.subr.bf16.mxu0 0
    %1176 = vmatpush1.bf16.msra.mxu0 %v1161
    %1177 = vmatprep.subr.bf16.mxu0 0
    %1178 = vmatpush1.bf16.msra.mxu0 0
    %1179 = vmatprep.subr.bf16.mxu0 0
    %1180 = vmatpush1.bf16.msra.mxu0 0
    %1181 = vmatprep.subr.bf16.mxu0 0
    %1182 = vmatpush1.bf16.msra.mxu0 0
    %1183 = vmatprep.subr.bf16.mxu0 0
    %1184 = vmatpush1.bf16.msra.mxu0 0
    %1185 = vmatprep.subr.bf16.mxu0 0
    %1186 = vmatpush1.bf16.msra.mxu0 0
    %1187 = vmatprep.subr.bf16.mxu0 0
    %1188 = vmatpush1.bf16.msra.mxu0 0
    %1189 = vmatprep.subr.bf16.mxu0 0
    %1190 = vmatpush1.bf16.msra.mxu0 0
    %1191 = vmatprep.subr.bf16.mxu0 0
    %1192 = vmatpush1.bf16.msra.mxu0 0
    %1193 = vmatprep.subr.bf16.mxu0 0
    %1194 = vmatpush1.bf16.msra.mxu0 0
    %1195 = vmatprep.subr.bf16.mxu0 0
    %1196 = vmatpush1.bf16.msra.mxu0 0
    %1197 = vmatprep.subr.bf16.mxu0 0
    %1198 = vmatpush1.bf16.msra.mxu0 0
    %1199 = vmatprep.subr.bf16.mxu0 0
    %1200 = vmatpush1.bf16.msra.mxu0 0
    %1201 = vmatprep.mubr.bf16.mxu0 0
    %1202 = vmatmul.mubr.bf16.gmra.mrb[0].mxu0 %v1167
    %v1203 = vpop.f32.mrb[0].mxu0
    %v1204 = vadd.f32 0.0, %v1203
    %v1205 = vpop.f32.mrb[0].mxu0
    %v1206 = vpop.f32.mrb[0].mxu0
    %v1207 = vpop.f32.mrb[0].mxu0
    %1208 = vdwg.mxu0
    %v1209 = vpack.c.bf16 %v1204, %v1204
    %v1210 = vld [vmem:[%s10] sm:$0x1]
    %v1212 = vpack.i.b16 %v1210, %v1210
    %v1214 = vlaneseq
    %v1215 = vshrl.u32 %v1214, 7
    %v1216 = vsub.s32 0, %v1215
    %v1217 = vrot.slane %v1212, %v1216
    %v1218 = vadd.bf16 %v1209, %v1217
    %1219 = vst [vmem:[#allocation8] sm:$0xf] %v1218
    // Predicated region
    $region58: #{tpu_custom_call.1} parent=1 // pred_check
      _
    $region59: #{tpu_custom_call.1} parent=1 // pred_check_branch
      %1221 = sbr.rel (0) target = $region61
    $region60: #{tpu_custom_call.1} parent=1 // pred_region
      %s1223 = ssub.s32 64, 64
      %1224 = vsyncadd [#allocation4], %s1223
      %s1226 = sshll.u32 [#allocation8], 4
      %s1227 = int_to_ptr.vmem [resolvable:$true] %s1226
      %1229 = dma.vmem_to_hbm [thread:$0]  %s1227, 64, %s11, [#allocation4]
    $region61: #{tpu_custom_call.1} parent=1 // pred_fallthru
      _
    // Predicated region
    $region62: #{tpu_custom_call.1} parent=1 // pred_check
      _
    $region63: #{tpu_custom_call.1} parent=1 // pred_check_branch
      %1231 = sbr.rel (0) target = $region65
    $region64: #{tpu_custom_call.1} parent=1 // pred_region
      %1232 = dma.done [#allocation4], 64
    $region65: #{tpu_custom_call.1} parent=1 // pred_fallthru
      _
    %1233 = vsyncpa [#allocation3], 1
    %1234 = vsyncpa [#allocation6], 1
    %1235 = vsyncpa [#allocation4], 1

</llo_original>
